<compile_context>
chip_gen: v7x
topology: tpu7x:2x2x1
jax: 0.10.0
libtpu: 0.0.40
codegen_flags: <defaults>
</compile_context>

<pallas_src>
import functools

import jax
import jax.numpy as jnp
from jax import lax
from jax.experimental import pallas as pl
from jax.experimental.pallas import tpu as pltpu

LANES = 128  # native lane width; also 4*hidden_dim for the fused gates


def _round8(n):
    return ((n + 7) // 8) * 8


def slab_layout(input_dim, hidden_dim, latent_dim, num_classes):
    """Row offsets (all multiples of 8) of each parameter in the packed slab."""
    assert 4 * hidden_dim == LANES, "fused gate width must equal 128 lanes"
    assert num_classes + 1 <= LANES
    r_wih = 0
    r_whh = r_wih + _round8(input_dim)   # (LANES, LANES): rows H: are zero
    r_b = r_whh + LANES                  # fused bias b_ih + b_hh, 1 real row
    r_we = r_b + 8                       # (LANES, LANES): rows H:, lanes L: zero
    r_be = r_we + LANES
    r_wc = r_be + 8                      # (LANES, LANES): rows L:, lanes C: zero
    r_bc = r_wc + LANES                  # lanes C: hold -1e30 (softmax pad mask)
    rows = r_bc + 8
    return dict(wih=r_wih, whh=r_whh, b=r_b, we=r_we, be=r_be, wc=r_wc,
                bc=r_bc, rows=rows)


def pack_weights(params, input_dim, hidden_dim, latent_dim, num_classes):
    """One-time host-side prep: pack all parameters into one (R, 128) f32 slab."""
    lay = slab_layout(input_dim, hidden_dim, latent_dim, num_classes)
    slab = jnp.zeros((lay["rows"], LANES), jnp.float32)
    slab = slab.at[lay["wih"]:lay["wih"] + input_dim, :].set(params["wih"])
    slab = slab.at[lay["whh"]:lay["whh"] + hidden_dim, :].set(params["whh"])
    slab = slab.at[lay["b"], :].set(params["b"][0])
    slab = slab.at[lay["we"]:lay["we"] + hidden_dim, :latent_dim].set(params["we"])
    slab = slab.at[lay["be"], :latent_dim].set(params["be"][0])
    slab = slab.at[lay["wc"]:lay["wc"] + latent_dim, :num_classes].set(params["wc"])
    bc_row = jnp.full((LANES,), -1e30, jnp.float32)
    bc_row = bc_row.at[:num_classes].set(params["bc"][0])
    slab = slab.at[lay["bc"], :].set(bc_row)
    return slab


# ---------------------------------------------------------------------------
# Fused kernel: LSTM recurrence -> mean over time -> embedder -> classifier
# ---------------------------------------------------------------------------
def fused_kernel(x_ref, w_ref, out_ref, *, batch, seq, hidden, latent,
                 n_classes, layout):
    # x_ref  : (B*T, D) f32, batch-major rows (row index = b*T + t)
    # w_ref  : (R, 128) f32 packed weight slab (one DMA)
    # out_ref: (B, 128) f32: proba in lanes 0:C, argmax (as f32) in lane C
    f32, bf16 = jnp.float32, jnp.bfloat16
    B, T, H, L, C = batch, seq, hidden, latent, n_classes
    D = x_ref.shape[1]
    lay = layout

    # ---- loop-invariant weight sub-views of the single slab (bf16 MXU operands) ----
    wih = w_ref[pl.ds(lay["wih"], D), :].astype(bf16)       # (D, 128), gates i|f|g|o
    whh = w_ref[pl.ds(lay["whh"], LANES), :].astype(bf16)   # (128, 128), rows H: zero
    b = w_ref[pl.ds(lay["b"], 1), :]                        # (1, 128) f32, b_ih+b_hh

    # Hoisted, bias-folded input projection: one (B*T, D) @ (D, 4H) bf16 matmul
    # instead of per-step per-gate matmuls.
    xw = jnp.dot(x_ref[...].astype(bf16), wih, preferred_element_type=f32) + b

    # Per-step gate inputs are rows {b*T + t}.  Gathered with static slices +
    # concat once, outside the recurrence, so this only depends on xw and stays
    # off the serial h->h critical path (no host-side transpose needed).
    xw_steps = [
        jnp.concatenate([xw[bb * T + t:bb * T + t + 1, :] for bb in range(B)],
                        axis=0)
        for t in range(T)
    ]

    # Full-lane recurrent state: the real h / c live in the gate-i slot
    # (lanes 0:H); lanes H:128 carry bounded don't-care values which the
    # zero rows H:128 of whh annihilate in the recurrent matmul.
    h = jnp.zeros((B, LANES), f32)
    c = jnp.zeros((B, LANES), f32)
    acc = jnp.zeros((B, LANES), f32)

    # T is small & static -> fully unrolled.  whh is loop-invariant so the MXU
    # weight push can be hoisted/kept resident across the 8 serial matmuls.
    for t in range(T):
        gates = xw_steps[t] + jnp.dot(h.astype(bf16), whh,
                                      preferred_element_type=f32)   # (B, 128)
        # Full-vreg activations: 3 EUP pushes per step (sigmoid, tanh, tanh(c))
        # instead of 5; gate alignment goes to the otherwise-idle XLU (roll).
        sg = jax.nn.sigmoid(gates)           # i | f | . | o lanes meaningful
        th = jnp.tanh(gates)                 # . | . | g | . lanes meaningful
        f_g = pltpu.roll(sg, 3 * H, axis=1)  # f gate -> lanes 0:H
        g_g = pltpu.roll(th, 2 * H, axis=1)  # g gate -> lanes 0:H
        o_g = pltpu.roll(sg, 1 * H, axis=1)  # o gate -> lanes 0:H
        c = f_g * c + sg * g_g               # i (already at lanes 0:H) * g
        h = o_g * jnp.tanh(c)
        acc = acc + h                        # running sum for mean over time

    mean_h = acc * (1.0 / T)                 # rnn_use_last=False -> mean over T

    # ---- embedder + classifier head (lane-padded to 128; runs once) ----
    we = w_ref[pl.ds(lay["we"], LANES), :].astype(bf16)
    be = w_ref[pl.ds(lay["be"], 1), :]
    emb = jnp.dot(mean_h.astype(bf16), we, preferred_element_type=f32) + be

    # TODO(synk): sklearn `model.predict_proba` stand-in (linear + softmax).
    wc = w_ref[pl.ds(lay["wc"], LANES), :].astype(bf16)
    bc = w_ref[pl.ds(lay["bc"], 1), :]       # pad lanes carry -1e30
    logits = jnp.dot(emb.astype(bf16), wc, preferred_element_type=f32) + bc

    m = jnp.max(logits, axis=1, keepdims=True)
    e = jnp.exp(logits - m)                  # pad lanes -> exactly 0
    proba = e / jnp.sum(e, axis=1, keepdims=True)

    # argmax on logits (softmax is monotone); first-occurrence tie-break.
    lane = lax.broadcasted_iota(jnp.int32, (B, LANES), 1)
    arg = jnp.min(jnp.where(logits == m, lane, LANES), axis=1, keepdims=True)

    # Single lane-dense output slab: one unmasked store, one writeback DMA.
    out_ref[...] = jnp.where(lane == C, arg.astype(f32), proba)


# ---------------------------------------------------------------------------
# Parameters (gate order i|f|g|o, matching torch.nn.LSTM weight stacking)
# ---------------------------------------------------------------------------
def make_params(key, input_dim, hidden_dim, latent_dim, num_classes):
    ks = jax.random.split(key, 7)
    kh = 1.0 / jnp.sqrt(jnp.float32(hidden_dim))
    kl = 1.0 / jnp.sqrt(jnp.float32(latent_dim))
    u = lambda kk, shape, s: jax.random.uniform(kk, shape, jnp.float32, -s, s)
    return {
        "wih": u(ks[0], (input_dim, 4 * hidden_dim), kh),   # fused i|f|g|o
        "whh": u(ks[1], (hidden_dim, 4 * hidden_dim), kh),
        "b":   u(ks[2], (1, 4 * hidden_dim), kh),           # b_ih + b_hh folded
        "we":  u(ks[3], (hidden_dim, latent_dim), kh),
        "be":  u(ks[4], (1, latent_dim), kh),
        "wc":  u(ks[5], (latent_dim, num_classes), kl),
        "bc":  u(ks[6], (1, num_classes), kl),
    }


# ---------------------------------------------------------------------------
# Wrapper: single pallas_call, 2 input DMAs, 1 output DMA.  Gridless (the
# whole problem is < 250 KiB of VMEM).  If B ever grows, add a grid over B
# with dimension_semantics=("parallel",) to use v7x's second TensorCore.
# ---------------------------------------------------------------------------
def sklearn_model_forward(x, wslab, *, hidden_dim, latent_dim, num_classes,
                          layout):
    """SklearnModel.forward: embeddings -> predict_proba -> (argmax, proba)."""
    B, T, D = x.shape
    # Free metadata reshape (batch-major rows); no host-side transpose op.
    x2d = x.astype(jnp.float32).reshape(B * T, D)

    vmem = pl.BlockSpec(memory_space=pltpu.MemorySpace.VMEM)
    out = pl.pallas_call(
        functools.partial(fused_kernel, batch=B, seq=T, hidden=hidden_dim,
                          latent=latent_dim, n_classes=num_classes,
                          layout=layout),
        out_shape=jax.ShapeDtypeStruct((B, LANES), jnp.float32),
        in_specs=[vmem, vmem],
        out_specs=vmem,
    )(x2d, wslab)

    preds = out[:, num_classes].astype(jnp.int32)   # argmax stored as f32 in lane C
    proba = out[:, :num_classes]
    return preds, proba


# ---------------------------------------------------------------------------
# Pure-JAX f32 reference (LSTM -> mean -> embedder -> linear+softmax head)
# ---------------------------------------------------------------------------
def reference_forward(x, params, hidden_dim):
    H = hidden_dim
    B, T, D = x.shape
    x = x.astype(jnp.float32)
    h = jnp.zeros((B, H), jnp.float32)
    c = jnp.zeros((B, H), jnp.float32)
    hs = []
    for t in range(T):
        g = x[:, t, :] @ params["wih"] + h @ params["whh"] + params["b"]
        i = jax.nn.sigmoid(g[:, 0 * H:1 * H])
        f = jax.nn.sigmoid(g[:, 1 * H:2 * H])
        gg = jnp.tanh(g[:, 2 * H:3 * H])
        o = jax.nn.sigmoid(g[:, 3 * H:4 * H])
        c = f * c + i * gg
        h = o * jnp.tanh(c)
        hs.append(h)
    mean_h = jnp.mean(jnp.stack(hs, axis=1), axis=1)
    emb = mean_h @ params["we"] + params["be"]
    logits = emb @ params["wc"] + params["bc"]
    proba = jax.nn.softmax(logits, axis=1)
    return jnp.argmax(proba, axis=1), proba


if __name__ == "__main__":
    # Small shapes consistent with the module: batch=2, seq=8, input_dim=8,
    # hidden_dim=32 (4H = 128 lanes), latent_dim=16, num_classes=4.
    B, T, D = 2, 8, 8
    HIDDEN, LATENT, NUM_CLASSES = 32, 16, 4

    key = jax.random.PRNGKey(0)
    kx, kp = jax.random.split(key)
    x = jax.random.normal(kx, (B, T, D), jnp.float32)   # (batch, seq, input_dim)
    params = make_params(kp, D, HIDDEN, LATENT, NUM_CLASSES)

    layout = slab_layout(D, HIDDEN, LATENT, NUM_CLASSES)
    wslab = pack_weights(params, D, HIDDEN, LATENT, NUM_CLASSES)  # one-time prep

    fwd = jax.jit(functools.partial(sklearn_model_forward, hidden_dim=HIDDEN,
                                    latent_dim=LATENT, num_classes=NUM_CLASSES,
                                    layout=layout))
    preds, proba = fwd(x, wslab)
    jax.block_until_ready((preds, proba))

    # Shape / sanity checks.
    assert preds.shape == (B,) and proba.shape == (B, NUM_CLASSES)
    assert bool(jnp.all(jnp.isfinite(proba)))
    assert bool(jnp.all((preds >= 0) & (preds < NUM_CLASSES)))

    # Numerical check vs. the pure-JAX f32 reference (bf16 MXU operands ->
    # loose absolute tolerance on the probabilities).
    ref_preds, ref_proba = reference_forward(x, params, HIDDEN)
    assert bool(jnp.max(jnp.abs(proba - ref_proba)) < 5e-2), "proba mismatch"
    # argmax may legitimately flip on near-ties under bf16; only enforce it
    # where the reference top-2 probability margin is clear.
    top2 = jnp.sort(ref_proba, axis=1)
    margin = top2[:, -1] - top2[:, -2]
    assert bool(jnp.all((preds == ref_preds) | (margin < 5e-2))), "argmax mismatch"

    print("KERNEL_OK")
</pallas_src>

<mosaic_0001>
module attributes {stable_mosaic.version = 11 : i64} {
  func.func @fused_kernel(%arg0: memref<16x8xf32, #tpu.memory_space<vmem>>, %arg1: memref<416x128xf32, #tpu.memory_space<vmem>>, %arg2: memref<2x128xf32, #tpu.memory_space<vmem>>) attributes {dimension_semantics = [], scalar_prefetch = 0 : i64, scratch_operands = 0 : i64, tpu.core_type = #tpu.core_type<tc>} {
    %c0 = arith.constant 0 : index
    %c0_0 = arith.constant 0 : index
    %0 = vector.load %arg1[%c0, %c0_0] : memref<416x128xf32, #tpu.memory_space<vmem>>, vector<8x128xf32>
    %1 = arith.truncf %0 : vector<8x128xf32> to vector<8x128xbf16>
    %c8 = arith.constant 8 : index
    %c0_1 = arith.constant 0 : index
    %2 = vector.load %arg1[%c8, %c0_1] : memref<416x128xf32, #tpu.memory_space<vmem>>, vector<128x128xf32>
    %3 = arith.truncf %2 : vector<128x128xf32> to vector<128x128xbf16>
    %c136 = arith.constant 136 : index
    %c0_2 = arith.constant 0 : index
    %4 = vector.load %arg1[%c136, %c0_2] : memref<416x128xf32, #tpu.memory_space<vmem>>, vector<1x128xf32>
    %c0_3 = arith.constant 0 : index
    %c0_4 = arith.constant 0 : index
    %5 = vector.load %arg0[%c0_3, %c0_4] : memref<16x8xf32, #tpu.memory_space<vmem>>, vector<16x8xf32>
    %6 = arith.truncf %5 : vector<16x8xf32> to vector<16x8xbf16>
    %cst = arith.constant dense<0.000000e+00> : vector<16x128xf32>
    %7 = tpu.matmul %6, %1, %cst {dimension_numbers = #tpu.dot_dimension_numbers<[1], [0], [0], [1], [0, 0, 1, 1], [], []>} : vector<16x8xbf16>, vector<8x128xbf16>, vector<16x128xf32> -> vector<16x128xf32>
    %8 = vector.broadcast %4 : vector<1x128xf32> to vector<16x128xf32>
    %9 = arith.addf %7, %8 : vector<16x128xf32>
    %10 = vector.extract_strided_slice %9 {offsets = [0, 0], sizes = [1, 128], strides = [1, 1]} : vector<16x128xf32> to vector<1x128xf32>
    %11 = vector.extract_strided_slice %9 {offsets = [8, 0], sizes = [1, 128], strides = [1, 1]} : vector<16x128xf32> to vector<1x128xf32>
    %12 = tpu.concatenate %10, %11 in 0 : vector<1x128xf32>, vector<1x128xf32> -> vector<2x128xf32>
    %13 = vector.extract_strided_slice %9 {offsets = [1, 0], sizes = [1, 128], strides = [1, 1]} : vector<16x128xf32> to vector<1x128xf32>
    %14 = vector.extract_strided_slice %9 {offsets = [9, 0], sizes = [1, 128], strides = [1, 1]} : vector<16x128xf32> to vector<1x128xf32>
    %15 = tpu.concatenate %13, %14 in 0 : vector<1x128xf32>, vector<1x128xf32> -> vector<2x128xf32>
    %16 = vector.extract_strided_slice %9 {offsets = [2, 0], sizes = [1, 128], strides = [1, 1]} : vector<16x128xf32> to vector<1x128xf32>
    %17 = vector.extract_strided_slice %9 {offsets = [10, 0], sizes = [1, 128], strides = [1, 1]} : vector<16x128xf32> to vector<1x128xf32>
    %18 = tpu.concatenate %16, %17 in 0 : vector<1x128xf32>, vector<1x128xf32> -> vector<2x128xf32>
    %19 = vector.extract_strided_slice %9 {offsets = [3, 0], sizes = [1, 128], strides = [1, 1]} : vector<16x128xf32> to vector<1x128xf32>
    %20 = vector.extract_strided_slice %9 {offsets = [11, 0], sizes = [1, 128], strides = [1, 1]} : vector<16x128xf32> to vector<1x128xf32>
    %21 = tpu.concatenate %19, %20 in 0 : vector<1x128xf32>, vector<1x128xf32> -> vector<2x128xf32>
    %22 = vector.extract_strided_slice %9 {offsets = [4, 0], sizes = [1, 128], strides = [1, 1]} : vector<16x128xf32> to vector<1x128xf32>
    %23 = vector.extract_strided_slice %9 {offsets = [12, 0], sizes = [1, 128], strides = [1, 1]} : vector<16x128xf32> to vector<1x128xf32>
    %24 = tpu.concatenate %22, %23 in 0 : vector<1x128xf32>, vector<1x128xf32> -> vector<2x128xf32>
    %25 = vector.extract_strided_slice %9 {offsets = [5, 0], sizes = [1, 128], strides = [1, 1]} : vector<16x128xf32> to vector<1x128xf32>
    %26 = vector.extract_strided_slice %9 {offsets = [13, 0], sizes = [1, 128], strides = [1, 1]} : vector<16x128xf32> to vector<1x128xf32>
    %27 = tpu.concatenate %25, %26 in 0 : vector<1x128xf32>, vector<1x128xf32> -> vector<2x128xf32>
    %28 = vector.extract_strided_slice %9 {offsets = [6, 0], sizes = [1, 128], strides = [1, 1]} : vector<16x128xf32> to vector<1x128xf32>
    %29 = vector.extract_strided_slice %9 {offsets = [14, 0], sizes = [1, 128], strides = [1, 1]} : vector<16x128xf32> to vector<1x128xf32>
    %30 = tpu.concatenate %28, %29 in 0 : vector<1x128xf32>, vector<1x128xf32> -> vector<2x128xf32>
    %31 = vector.extract_strided_slice %9 {offsets = [7, 0], sizes = [1, 128], strides = [1, 1]} : vector<16x128xf32> to vector<1x128xf32>
    %32 = vector.extract_strided_slice %9 {offsets = [15, 0], sizes = [1, 128], strides = [1, 1]} : vector<16x128xf32> to vector<1x128xf32>
    %33 = tpu.concatenate %31, %32 in 0 : vector<1x128xf32>, vector<1x128xf32> -> vector<2x128xf32>
    %cst_5 = arith.constant 0.000000e+00 : f32
    %34 = vector.broadcast %cst_5 : f32 to vector<2x128xf32>
    %cst_6 = arith.constant 0.000000e+00 : f32
    %35 = vector.broadcast %cst_6 : f32 to vector<2x128xf32>
    %cst_7 = arith.constant 0.000000e+00 : f32
    %36 = vector.broadcast %cst_7 : f32 to vector<2x128xf32>
    %37 = arith.truncf %34 : vector<2x128xf32> to vector<2x128xbf16>
    %cst_8 = arith.constant dense<0.000000e+00> : vector<2x128xf32>
    %38 = tpu.matmul %37, %3, %cst_8 {dimension_numbers = #tpu.dot_dimension_numbers<[1], [0], [0], [1], [0, 0, 1, 1], [], []>} : vector<2x128xbf16>, vector<128x128xbf16>, vector<2x128xf32> -> vector<2x128xf32>
    %39 = arith.addf %12, %38 : vector<2x128xf32>
    %40 = arith.negf %39 : vector<2x128xf32>
    %41 = math.exp %40 : vector<2x128xf32>
    %cst_9 = arith.constant 1.000000e+00 : f32
    %42 = vector.broadcast %cst_9 : f32 to vector<2x128xf32>
    %43 = arith.addf %42, %41 : vector<2x128xf32>
    %44 = arith.divf %42, %43 : vector<2x128xf32>
    %45 = math.tanh %39 : vector<2x128xf32>
    %c96_i32 = arith.constant 96 : i32
    %46 = tpu.dynamic_rotate %44 by %c96_i32 dim 1 : vector<2x128xf32>, i32 -> vector<2x128xf32>
    %c64_i32 = arith.constant 64 : i32
    %47 = tpu.dynamic_rotate %45 by %c64_i32 dim 1 : vector<2x128xf32>, i32 -> vector<2x128xf32>
    %c32_i32 = arith.constant 32 : i32
    %48 = tpu.dynamic_rotate %44 by %c32_i32 dim 1 : vector<2x128xf32>, i32 -> vector<2x128xf32>
    %49 = arith.mulf %46, %35 : vector<2x128xf32>
    %50 = arith.mulf %44, %47 : vector<2x128xf32>
    %51 = arith.addf %49, %50 : vector<2x128xf32>
    %52 = math.tanh %51 : vector<2x128xf32>
    %53 = arith.mulf %48, %52 : vector<2x128xf32>
    %54 = arith.addf %36, %53 : vector<2x128xf32>
    %55 = arith.truncf %53 : vector<2x128xf32> to vector<2x128xbf16>
    %cst_10 = arith.constant dense<0.000000e+00> : vector<2x128xf32>
    %56 = tpu.matmul %55, %3, %cst_10 {dimension_numbers = #tpu.dot_dimension_numbers<[1], [0], [0], [1], [0, 0, 1, 1], [], []>} : vector<2x128xbf16>, vector<128x128xbf16>, vector<2x128xf32> -> vector<2x128xf32>
    %57 = arith.addf %15, %56 : vector<2x128xf32>
    %58 = arith.negf %57 : vector<2x128xf32>
    %59 = math.exp %58 : vector<2x128xf32>
    %cst_11 = arith.constant 1.000000e+00 : f32
    %60 = vector.broadcast %cst_11 : f32 to vector<2x128xf32>
    %61 = arith.addf %60, %59 : vector<2x128xf32>
    %62 = arith.divf %60, %61 : vector<2x128xf32>
    %63 = math.tanh %57 : vector<2x128xf32>
    %c96_i32_12 = arith.constant 96 : i32
    %64 = tpu.dynamic_rotate %62 by %c96_i32_12 dim 1 : vector<2x128xf32>, i32 -> vector<2x128xf32>
    %c64_i32_13 = arith.constant 64 : i32
    %65 = tpu.dynamic_rotate %63 by %c64_i32_13 dim 1 : vector<2x128xf32>, i32 -> vector<2x128xf32>
    %c32_i32_14 = arith.constant 32 : i32
    %66 = tpu.dynamic_rotate %62 by %c32_i32_14 dim 1 : vector<2x128xf32>, i32 -> vector<2x128xf32>
    %67 = arith.mulf %64, %51 : vector<2x128xf32>
    %68 = arith.mulf %62, %65 : vector<2x128xf32>
    %69 = arith.addf %67, %68 : vector<2x128xf32>
    %70 = math.tanh %69 : vector<2x128xf32>
    %71 = arith.mulf %66, %70 : vector<2x128xf32>
    %72 = arith.addf %54, %71 : vector<2x128xf32>
    %73 = arith.truncf %71 : vector<2x128xf32> to vector<2x128xbf16>
    %cst_15 = arith.constant dense<0.000000e+00> : vector<2x128xf32>
    %74 = tpu.matmul %73, %3, %cst_15 {dimension_numbers = #tpu.dot_dimension_numbers<[1], [0], [0], [1], [0, 0, 1, 1], [], []>} : vector<2x128xbf16>, vector<128x128xbf16>, vector<2x128xf32> -> vector<2x128xf32>
    %75 = arith.addf %18, %74 : vector<2x128xf32>
    %76 = arith.negf %75 : vector<2x128xf32>
    %77 = math.exp %76 : vector<2x128xf32>
    %cst_16 = arith.constant 1.000000e+00 : f32
    %78 = vector.broadcast %cst_16 : f32 to vector<2x128xf32>
    %79 = arith.addf %78, %77 : vector<2x128xf32>
    %80 = arith.divf %78, %79 : vector<2x128xf32>
    %81 = math.tanh %75 : vector<2x128xf32>
    %c96_i32_17 = arith.constant 96 : i32
    %82 = tpu.dynamic_rotate %80 by %c96_i32_17 dim 1 : vector<2x128xf32>, i32 -> vector<2x128xf32>
    %c64_i32_18 = arith.constant 64 : i32
    %83 = tpu.dynamic_rotate %81 by %c64_i32_18 dim 1 : vector<2x128xf32>, i32 -> vector<2x128xf32>
    %c32_i32_19 = arith.constant 32 : i32
    %84 = tpu.dynamic_rotate %80 by %c32_i32_19 dim 1 : vector<2x128xf32>, i32 -> vector<2x128xf32>
    %85 = arith.mulf %82, %69 : vector<2x128xf32>
    %86 = arith.mulf %80, %83 : vector<2x128xf32>
    %87 = arith.addf %85, %86 : vector<2x128xf32>
    %88 = math.tanh %87 : vector<2x128xf32>
    %89 = arith.mulf %84, %88 : vector<2x128xf32>
    %90 = arith.addf %72, %89 : vector<2x128xf32>
    %91 = arith.truncf %89 : vector<2x128xf32> to vector<2x128xbf16>
    %cst_20 = arith.constant dense<0.000000e+00> : vector<2x128xf32>
    %92 = tpu.matmul %91, %3, %cst_20 {dimension_numbers = #tpu.dot_dimension_numbers<[1], [0], [0], [1], [0, 0, 1, 1], [], []>} : vector<2x128xbf16>, vector<128x128xbf16>, vector<2x128xf32> -> vector<2x128xf32>
    %93 = arith.addf %21, %92 : vector<2x128xf32>
    %94 = arith.negf %93 : vector<2x128xf32>
    %95 = math.exp %94 : vector<2x128xf32>
    %cst_21 = arith.constant 1.000000e+00 : f32
    %96 = vector.broadcast %cst_21 : f32 to vector<2x128xf32>
    %97 = arith.addf %96, %95 : vector<2x128xf32>
    %98 = arith.divf %96, %97 : vector<2x128xf32>
    %99 = math.tanh %93 : vector<2x128xf32>
    %c96_i32_22 = arith.constant 96 : i32
    %100 = tpu.dynamic_rotate %98 by %c96_i32_22 dim 1 : vector<2x128xf32>, i32 -> vector<2x128xf32>
    %c64_i32_23 = arith.constant 64 : i32
    %101 = tpu.dynamic_rotate %99 by %c64_i32_23 dim 1 : vector<2x128xf32>, i32 -> vector<2x128xf32>
    %c32_i32_24 = arith.constant 32 : i32
    %102 = tpu.dynamic_rotate %98 by %c32_i32_24 dim 1 : vector<2x128xf32>, i32 -> vector<2x128xf32>
    %103 = arith.mulf %100, %87 : vector<2x128xf32>
    %104 = arith.mulf %98, %101 : vector<2x128xf32>
    %105 = arith.addf %103, %104 : vector<2x128xf32>
    %106 = math.tanh %105 : vector<2x128xf32>
    %107 = arith.mulf %102, %106 : vector<2x128xf32>
    %108 = arith.addf %90, %107 : vector<2x128xf32>
    %109 = arith.truncf %107 : vector<2x128xf32> to vector<2x128xbf16>
    %cst_25 = arith.constant dense<0.000000e+00> : vector<2x128xf32>
    %110 = tpu.matmul %109, %3, %cst_25 {dimension_numbers = #tpu.dot_dimension_numbers<[1], [0], [0], [1], [0, 0, 1, 1], [], []>} : vector<2x128xbf16>, vector<128x128xbf16>, vector<2x128xf32> -> vector<2x128xf32>
    %111 = arith.addf %24, %110 : vector<2x128xf32>
    %112 = arith.negf %111 : vector<2x128xf32>
    %113 = math.exp %112 : vector<2x128xf32>
    %cst_26 = arith.constant 1.000000e+00 : f32
    %114 = vector.broadcast %cst_26 : f32 to vector<2x128xf32>
    %115 = arith.addf %114, %113 : vector<2x128xf32>
    %116 = arith.divf %114, %115 : vector<2x128xf32>
    %117 = math.tanh %111 : vector<2x128xf32>
    %c96_i32_27 = arith.constant 96 : i32
    %118 = tpu.dynamic_rotate %116 by %c96_i32_27 dim 1 : vector<2x128xf32>, i32 -> vector<2x128xf32>
    %c64_i32_28 = arith.constant 64 : i32
    %119 = tpu.dynamic_rotate %117 by %c64_i32_28 dim 1 : vector<2x128xf32>, i32 -> vector<2x128xf32>
    %c32_i32_29 = arith.constant 32 : i32
    %120 = tpu.dynamic_rotate %116 by %c32_i32_29 dim 1 : vector<2x128xf32>, i32 -> vector<2x128xf32>
    %121 = arith.mulf %118, %105 : vector<2x128xf32>
    %122 = arith.mulf %116, %119 : vector<2x128xf32>
    %123 = arith.addf %121, %122 : vector<2x128xf32>
    %124 = math.tanh %123 : vector<2x128xf32>
    %125 = arith.mulf %120, %124 : vector<2x128xf32>
    %126 = arith.addf %108, %125 : vector<2x128xf32>
    %127 = arith.truncf %125 : vector<2x128xf32> to vector<2x128xbf16>
    %cst_30 = arith.constant dense<0.000000e+00> : vector<2x128xf32>
    %128 = tpu.matmul %127, %3, %cst_30 {dimension_numbers = #tpu.dot_dimension_numbers<[1], [0], [0], [1], [0, 0, 1, 1], [], []>} : vector<2x128xbf16>, vector<128x128xbf16>, vector<2x128xf32> -> vector<2x128xf32>
    %129 = arith.addf %27, %128 : vector<2x128xf32>
    %130 = arith.negf %129 : vector<2x128xf32>
    %131 = math.exp %130 : vector<2x128xf32>
    %cst_31 = arith.constant 1.000000e+00 : f32
    %132 = vector.broadcast %cst_31 : f32 to vector<2x128xf32>
    %133 = arith.addf %132, %131 : vector<2x128xf32>
    %134 = arith.divf %132, %133 : vector<2x128xf32>
    %135 = math.tanh %129 : vector<2x128xf32>
    %c96_i32_32 = arith.constant 96 : i32
    %136 = tpu.dynamic_rotate %134 by %c96_i32_32 dim 1 : vector<2x128xf32>, i32 -> vector<2x128xf32>
    %c64_i32_33 = arith.constant 64 : i32
    %137 = tpu.dynamic_rotate %135 by %c64_i32_33 dim 1 : vector<2x128xf32>, i32 -> vector<2x128xf32>
    %c32_i32_34 = arith.constant 32 : i32
    %138 = tpu.dynamic_rotate %134 by %c32_i32_34 dim 1 : vector<2x128xf32>, i32 -> vector<2x128xf32>
    %139 = arith.mulf %136, %123 : vector<2x128xf32>
    %140 = arith.mulf %134, %137 : vector<2x128xf32>
    %141 = arith.addf %139, %140 : vector<2x128xf32>
    %142 = math.tanh %141 : vector<2x128xf32>
    %143 = arith.mulf %138, %142 : vector<2x128xf32>
    %144 = arith.addf %126, %143 : vector<2x128xf32>
    %145 = arith.truncf %143 : vector<2x128xf32> to vector<2x128xbf16>
    %cst_35 = arith.constant dense<0.000000e+00> : vector<2x128xf32>
    %146 = tpu.matmul %145, %3, %cst_35 {dimension_numbers = #tpu.dot_dimension_numbers<[1], [0], [0], [1], [0, 0, 1, 1], [], []>} : vector<2x128xbf16>, vector<128x128xbf16>, vector<2x128xf32> -> vector<2x128xf32>
    %147 = arith.addf %30, %146 : vector<2x128xf32>
    %148 = arith.negf %147 : vector<2x128xf32>
    %149 = math.exp %148 : vector<2x128xf32>
    %cst_36 = arith.constant 1.000000e+00 : f32
    %150 = vector.broadcast %cst_36 : f32 to vector<2x128xf32>
    %151 = arith.addf %150, %149 : vector<2x128xf32>
    %152 = arith.divf %150, %151 : vector<2x128xf32>
    %153 = math.tanh %147 : vector<2x128xf32>
    %c96_i32_37 = arith.constant 96 : i32
    %154 = tpu.dynamic_rotate %152 by %c96_i32_37 dim 1 : vector<2x128xf32>, i32 -> vector<2x128xf32>
    %c64_i32_38 = arith.constant 64 : i32
    %155 = tpu.dynamic_rotate %153 by %c64_i32_38 dim 1 : vector<2x128xf32>, i32 -> vector<2x128xf32>
    %c32_i32_39 = arith.constant 32 : i32
    %156 = tpu.dynamic_rotate %152 by %c32_i32_39 dim 1 : vector<2x128xf32>, i32 -> vector<2x128xf32>
    %157 = arith.mulf %154, %141 : vector<2x128xf32>
    %158 = arith.mulf %152, %155 : vector<2x128xf32>
    %159 = arith.addf %157, %158 : vector<2x128xf32>
    %160 = math.tanh %159 : vector<2x128xf32>
    %161 = arith.mulf %156, %160 : vector<2x128xf32>
    %162 = arith.addf %144, %161 : vector<2x128xf32>
    %163 = arith.truncf %161 : vector<2x128xf32> to vector<2x128xbf16>
    %cst_40 = arith.constant dense<0.000000e+00> : vector<2x128xf32>
    %164 = tpu.matmul %163, %3, %cst_40 {dimension_numbers = #tpu.dot_dimension_numbers<[1], [0], [0], [1], [0, 0, 1, 1], [], []>} : vector<2x128xbf16>, vector<128x128xbf16>, vector<2x128xf32> -> vector<2x128xf32>
    %165 = arith.addf %33, %164 : vector<2x128xf32>
    %166 = arith.negf %165 : vector<2x128xf32>
    %167 = math.exp %166 : vector<2x128xf32>
    %cst_41 = arith.constant 1.000000e+00 : f32
    %168 = vector.broadcast %cst_41 : f32 to vector<2x128xf32>
    %169 = arith.addf %168, %167 : vector<2x128xf32>
    %170 = arith.divf %168, %169 : vector<2x128xf32>
    %171 = math.tanh %165 : vector<2x128xf32>
    %c96_i32_42 = arith.constant 96 : i32
    %172 = tpu.dynamic_rotate %170 by %c96_i32_42 dim 1 : vector<2x128xf32>, i32 -> vector<2x128xf32>
    %c64_i32_43 = arith.constant 64 : i32
    %173 = tpu.dynamic_rotate %171 by %c64_i32_43 dim 1 : vector<2x128xf32>, i32 -> vector<2x128xf32>
    %c32_i32_44 = arith.constant 32 : i32
    %174 = tpu.dynamic_rotate %170 by %c32_i32_44 dim 1 : vector<2x128xf32>, i32 -> vector<2x128xf32>
    %175 = arith.mulf %172, %159 : vector<2x128xf32>
    %176 = arith.mulf %170, %173 : vector<2x128xf32>
    %177 = arith.addf %175, %176 : vector<2x128xf32>
    %178 = math.tanh %177 : vector<2x128xf32>
    %179 = arith.mulf %174, %178 : vector<2x128xf32>
    %180 = arith.addf %162, %179 : vector<2x128xf32>
    %cst_45 = arith.constant 1.250000e-01 : f32
    %181 = vector.broadcast %cst_45 : f32 to vector<2x128xf32>
    %182 = arith.mulf %180, %181 : vector<2x128xf32>
    %c144 = arith.constant 144 : index
    %c0_46 = arith.constant 0 : index
    %183 = vector.load %arg1[%c144, %c0_46] : memref<416x128xf32, #tpu.memory_space<vmem>>, vector<128x128xf32>
    %184 = arith.truncf %183 : vector<128x128xf32> to vector<128x128xbf16>
    %c272 = arith.constant 272 : index
    %c0_47 = arith.constant 0 : index
    %185 = vector.load %arg1[%c272, %c0_47] : memref<416x128xf32, #tpu.memory_space<vmem>>, vector<1x128xf32>
    %186 = arith.truncf %182 : vector<2x128xf32> to vector<2x128xbf16>
    %cst_48 = arith.constant dense<0.000000e+00> : vector<2x128xf32>
    %187 = tpu.matmul %186, %184, %cst_48 {dimension_numbers = #tpu.dot_dimension_numbers<[1], [0], [0], [1], [0, 0, 1, 1], [], []>} : vector<2x128xbf16>, vector<128x128xbf16>, vector<2x128xf32> -> vector<2x128xf32>
    %188 = vector.broadcast %185 : vector<1x128xf32> to vector<2x128xf32>
    %189 = arith.addf %187, %188 : vector<2x128xf32>
    %c280 = arith.constant 280 : index
    %c0_49 = arith.constant 0 : index
    %190 = vector.load %arg1[%c280, %c0_49] : memref<416x128xf32, #tpu.memory_space<vmem>>, vector<128x128xf32>
    %191 = arith.truncf %190 : vector<128x128xf32> to vector<128x128xbf16>
    %c408 = arith.constant 408 : index
    %c0_50 = arith.constant 0 : index
    %192 = vector.load %arg1[%c408, %c0_50] : memref<416x128xf32, #tpu.memory_space<vmem>>, vector<1x128xf32>
    %193 = arith.truncf %189 : vector<2x128xf32> to vector<2x128xbf16>
    %cst_51 = arith.constant dense<0.000000e+00> : vector<2x128xf32>
    %194 = tpu.matmul %193, %191, %cst_51 {dimension_numbers = #tpu.dot_dimension_numbers<[1], [0], [0], [1], [0, 0, 1, 1], [], []>} : vector<2x128xbf16>, vector<128x128xbf16>, vector<2x128xf32> -> vector<2x128xf32>
    %195 = vector.broadcast %192 : vector<1x128xf32> to vector<2x128xf32>
    %196 = arith.addf %194, %195 : vector<2x128xf32>
    %cst_52 = arith.constant dense<0xFF800000> : vector<2xf32>
    %197 = vector.multi_reduction <maximumf>, %196, %cst_52 [1] : vector<2x128xf32> to vector<2xf32>
    %198 = vector.shape_cast %197 : vector<2xf32> to vector<2x1xf32>
    %199 = vector.broadcast %198 : vector<2x1xf32> to vector<2x128xf32>
    %200 = arith.subf %196, %199 : vector<2x128xf32>
    %201 = math.exp %200 : vector<2x128xf32>
    %cst_53 = arith.constant dense<0.000000e+00> : vector<2xf32>
    %202 = vector.multi_reduction <add>, %201, %cst_53 [1] : vector<2x128xf32> to vector<2xf32>
    %203 = vector.shape_cast %202 : vector<2xf32> to vector<2x1xf32>
    %204 = vector.broadcast %203 : vector<2x1xf32> to vector<2x128xf32>
    %205 = arith.divf %201, %204 : vector<2x128xf32>
    %206 = tpu.iota {dimensions = array<i32: 1>} : vector<2x128xi32>
    %207 = vector.broadcast %198 : vector<2x1xf32> to vector<2x128xf32>
    %208 = arith.cmpf oeq, %196, %207 : vector<2x128xf32>
    %c128_i32 = arith.constant 128 : i32
    %209 = vector.broadcast %c128_i32 : i32 to vector<2x128xi32>
    %210 = arith.select %208, %206, %209 : vector<2x128xi1>, vector<2x128xi32>
    %cst_54 = arith.constant dense<2147483647> : vector<2xi32>
    %211 = vector.multi_reduction <minsi>, %210, %cst_54 [1] : vector<2x128xi32> to vector<2xi32>
    %212 = vector.shape_cast %211 : vector<2xi32> to vector<2x1xi32>
    %c4_i32 = arith.constant 4 : i32
    %213 = vector.broadcast %c4_i32 : i32 to vector<2x128xi32>
    %214 = arith.cmpi eq, %206, %213 : vector<2x128xi32>
    %215 = arith.sitofp %212 : vector<2x1xi32> to vector<2x1xf32>
    %216 = vector.shape_cast %215 : vector<2x1xf32> to vector<2x1xf32>
    %217 = vector.broadcast %216 : vector<2x1xf32> to vector<2x128xf32>
    %218 = arith.select %214, %217, %205 : vector<2x128xi1>, vector<2x128xf32>
    %c0_55 = arith.constant 0 : index
    %c0_56 = arith.constant 0 : index
    %219 = vector.load %arg2[%c0_55, %c0_56] : memref<2x128xf32, #tpu.memory_space<vmem>>, vector<2x128xf32>
    tpu.vector_store %arg2[%c0_55, %c0_56], %218 {strides = array<i32>} : memref<2x128xf32, #tpu.memory_space<vmem>>, vector<2x128xf32>,
    return
  }
}

</mosaic_0001>

<llo_original>
// kernel: sklearn_model_forward.1
$region0: #{sklearn_model_forward.1}
  #allocation0 [shape = 'u32[]', space=smem, size = 0x4, offset = 0x4, fixed_abs, tag = 'smem constant byte address 0x4 - core index']
  #allocation1 [shape = 'u32[144,128]{1,0:T(1,128)}', space=vmem, size = 0x12000, scoped, tag = 'internal scratch']
  %s0 = inlined_call_operand.hbm [shape: f32[16,8], index: 0, kind: input, shape index: {}]
  %s1 = inlined_call_operand.hbm [shape: f32[416,128], index: 1, kind: input, shape index: {}]
  %s2 = inlined_call_operand.vmem [shape: f32[2,128], index: 2, kind: output, shape index: {}]
  %s3 = sld [smem:[#allocation0]]
  $region26: #{sklearn_model_forward.1} parent=0
    _
  %s5 = ssub.s32 1, %s3
  %s6 = scalar_select 0, %s5, %s3
  $region1: #{sklearn_model_forward.1} parent=0
    #allocation2 [shape = 'u8[8192]{0}', space=vmem, size = 0x2000, scoped, tag = 'input window, operand 0, single buffered']
    #allocation3 [shape = 's32[1]{0}', space=sflag, size = 0x4, scoped, tag = 'scoped memory for sklearn_model_forward.1']
    #allocation4 [shape = 'u8[212992]{0}', space=vmem, size = 0x34000, scoped, tag = 'input window, operand 1, single buffered']
    #allocation5 [shape = 's32[1]{0}', space=sflag, size = 0x4, scoped, tag = 'scoped memory for sklearn_model_forward.1']
    %7 = vsyncpa [#allocation3], 0
    %8 = vsyncpa [#allocation5], 0
    // Predicated region
    $region2: #{sklearn_model_forward.1} parent=1 // pred_check
      _
    $region3: #{sklearn_model_forward.1} parent=1 // pred_check_branch
      %10 = sbr.rel (0) target = $region5
    $region4: #{sklearn_model_forward.1} parent=1 // pred_region
      %s12 = ssub.s32 256, 256
      %13 = vsyncadd [#allocation3], %s12
      %s14 = sshll.u32 [#allocation2], 4
      %s15 = int_to_ptr.vmem [resolvable:$true] %s14
      %20 = dma.hbm_to_vmem [thread:$0]  %s0, 256, %s15, [#allocation3], 128, 128, 8
    $region5: #{sklearn_model_forward.1} parent=1 // pred_fallthru
      _
    // Predicated region
    $region6: #{sklearn_model_forward.1} parent=1 // pred_check
      _
    $region7: #{sklearn_model_forward.1} parent=1 // pred_check_branch
      %22 = sbr.rel (0) target = $region9
    $region8: #{sklearn_model_forward.1} parent=1 // pred_region
      %s24 = ssub.s32 6656, 6656
      %25 = vsyncadd [#allocation5], %s24
      %s26 = sshll.u32 [#allocation4], 4
      %s27 = int_to_ptr.vmem [resolvable:$true] %s26
      %32 = dma.hbm_to_vmem [thread:$0]  %s1, 6656, %s27, [#allocation5], 128, 128, 8
    $region9: #{sklearn_model_forward.1} parent=1 // pred_fallthru
      _
    // Predicated region
    $region10: #{sklearn_model_forward.1} parent=1 // pred_check
      _
    $region11: #{sklearn_model_forward.1} parent=1 // pred_check_branch
      %34 = sbr.rel (0) target = $region13
    $region12: #{sklearn_model_forward.1} parent=1 // pred_region
      %35 = dma.done [#allocation3], 256
    $region13: #{sklearn_model_forward.1} parent=1 // pred_fallthru
      _
    // Predicated region
    $region14: #{sklearn_model_forward.1} parent=1 // pred_check
      _
    $region15: #{sklearn_model_forward.1} parent=1 // pred_check_branch
      %37 = sbr.rel (0) target = $region17
    $region16: #{sklearn_model_forward.1} parent=1 // pred_region
      %38 = dma.done [#allocation5], 6656
    $region17: #{sklearn_model_forward.1} parent=1 // pred_fallthru
      _
    %v40 = vld [vmem:[#allocation4] sm:$0xff]
    %v41 = vpack.c.bf16 %v40, %v40
    %v42 = vld [vmem:[#allocation4 + $0x8] sm:$0xff]
    %v43 = vld [vmem:[#allocation4 + $0x10] sm:$0xff]
    %v44 = vld [vmem:[#allocation4 + $0x18] sm:$0xff]
    %v45 = vld [vmem:[#allocation4 + $0x20] sm:$0xff]
    %v46 = vld [vmem:[#allocation4 + $0x28] sm:$0xff]
    %v47 = vld [vmem:[#allocation4 + $0x30] sm:$0xff]
    %v48 = vld [vmem:[#allocation4 + $0x38] sm:$0xff]
    %v49 = vld [vmem:[#allocation4 + $0x40] sm:$0xff]
    %v50 = vld [vmem:[#allocation4 + $0x48] sm:$0xff]
    %v51 = vld [vmem:[#allocation4 + $0x50] sm:$0xff]
    %v52 = vld [vmem:[#allocation4 + $0x58] sm:$0xff]
    %v53 = vld [vmem:[#allocation4 + $0x60] sm:$0xff]
    %v54 = vld [vmem:[#allocation4 + $0x68] sm:$0xff]
    %v55 = vld [vmem:[#allocation4 + $0x70] sm:$0xff]
    %v56 = vld [vmem:[#allocation4 + $0x78] sm:$0xff]
    %v57 = vld [vmem:[#allocation4 + $0x80] sm:$0xff]
    %v58 = vpack.c.bf16 %v43, %v42
    %v59 = vpack.c.bf16 %v45, %v44
    %v60 = vpack.c.bf16 %v47, %v46
    %v61 = vpack.c.bf16 %v49, %v48
    %v62 = vpack.c.bf16 %v51, %v50
    %v63 = vpack.c.bf16 %v53, %v52
    %v64 = vpack.c.bf16 %v55, %v54
    %v65 = vpack.c.bf16 %v57, %v56
    %v66 = vld [vmem:[#allocation4 + $0x88] sm:$0x1]
    %v67 = vld [vmem:[#allocation2] sm:$0xff]
    %v68 = vld [vmem:[#allocation2 + $0x8] sm:$0xff]
    %v69 = vpack.c.bf16 %v68, %v67
    %v70 = vlaneseq
    %v71 = vshrl.u32 %v70, 7
    %v72 = vsub.s32 0, %v71
    %v73 = vrot.slane %v66, %v72
    %vm74 = vcmask 64512
    %v76 = vsel %vm74, %v69, 0
    %vm78 = vcmask 1043456
    %v80 = vsel %vm78, %v41, 0
    %82 = vmatprep.subr.bf16.mxu0 0
    %83 = vmatpush1.bf16.msra.mxu0 %v80
    %84 = vmatprep.subr.bf16.mxu0 0
    %85 = vmatpush1.bf16.msra.mxu0 0
    %86 = vmatprep.subr.bf16.mxu0 0
    %87 = vmatpush1.bf16.msra.mxu0 0
    %88 = vmatprep.subr.bf16.mxu0 0
    %89 = vmatpush1.bf16.msra.mxu0 0
    %90 = vmatprep.subr.bf16.mxu0 0
    %91 = vmatpush1.bf16.msra.mxu0 0
    %92 = vmatprep.subr.bf16.mxu0 0
    %93 = vmatpush1.bf16.msra.mxu0 0
    %94 = vmatprep.subr.bf16.mxu0 0
    %95 = vmatpush1.bf16.msra.mxu0 0
    %96 = vmatprep.subr.bf16.mxu0 0
    %97 = vmatpush1.bf16.msra.mxu0 0
    %98 = vmatprep.subr.bf16.mxu0 0
    %99 = vmatpush1.bf16.msra.mxu0 0
    %100 = vmatprep.subr.bf16.mxu0 0
    %101 = vmatpush1.bf16.msra.mxu0 0
    %102 = vmatprep.subr.bf16.mxu0 0
    %103 = vmatpush1.bf16.msra.mxu0 0
    %104 = vmatprep.subr.bf16.mxu0 0
    %105 = vmatpush1.bf16.msra.mxu0 0
    %106 = vmatprep.subr.bf16.mxu0 0
    %107 = vmatpush1.bf16.msra.mxu0 0
    %108 = vmatprep.subr.bf16.mxu0 0
    %109 = vmatpush1.bf16.msra.mxu0 0
    %110 = vmatprep.subr.bf16.mxu0 0
    %111 = vmatpush1.bf16.msra.mxu0 0
    %112 = vmatprep.subr.bf16.mxu0 0
    %113 = vmatpush1.bf16.msra.mxu0 0
    %114 = vmatprep.mubr.bf16.mxu0 0
    %115 = vmatmul.mubr.bf16.gmra.mrb[0].mxu0 %v76
    %v116 = vpop.f32.mrb[0].mxu0
    %v117 = vadd.f32 %v73, %v116
    %v118 = vpop.f32.mrb[0].mxu0
    %v119 = vpop.f32.mrb[0].mxu0
    %v120 = vadd.f32 %v73, %v119
    %v121 = vpop.f32.mrb[0].mxu0
    %122 = vdwg.mxu0
    %v124 = vrot.slane %v120, 7
    %vm126 = vcmask 1040384
    %v127 = vsel %vm126, %v117, %v124
    %v129 = vrot.slane %v117, 1
    %v131 = vsel %vm126, %v129, %v120
    %v132 = vrot.slane %v117, 2
    %v134 = vrot.slane %v120, 1
    %v136 = vsel %vm126, %v132, %v134
    %v137 = vrot.slane %v117, 3
    %v139 = vrot.slane %v120, 2
    %v141 = vsel %vm126, %v137, %v139
    %v142 = vrot.slane %v117, 4
    %v144 = vrot.slane %v120, 3
    %v146 = vsel %vm126, %v142, %v144
    %v147 = vrot.slane %v117, 5
    %v149 = vrot.slane %v120, 4
    %v151 = vsel %vm126, %v147, %v149
    %v152 = vrot.slane %v117, 6
    %v154 = vrot.slane %v120, 5
    %v156 = vsel %vm126, %v152, %v154
    %v157 = vrot.slane %v117, 7
    %v159 = vrot.slane %v120, 6
    %v161 = vsel %vm126, %v157, %v159
    %162 = vmatprep.subr.bf16.mxu0 0
    %163 = vmatpush1.bf16.msra.mxu0 %v58
    %164 = vmatprep.subr.bf16.mxu0 0
    %165 = vmatpush1.bf16.msra.mxu0 %v59
    %166 = vmatprep.subr.bf16.mxu0 0
    %167 = vmatpush1.bf16.msra.mxu0 %v60
    %168 = vmatprep.subr.bf16.mxu0 0
    %169 = vmatpush1.bf16.msra.mxu0 %v61
    %170 = vmatprep.subr.bf16.mxu0 0
    %171 = vmatpush1.bf16.msra.mxu0 %v62
    %172 = vmatprep.subr.bf16.mxu0 0
    %173 = vmatpush1.bf16.msra.mxu0 %v63
    %174 = vmatprep.subr.bf16.mxu0 0
    %175 = vmatpush1.bf16.msra.mxu0 %v64
    %176 = vmatprep.subr.bf16.mxu0 0
    %177 = vmatpush1.bf16.msra.mxu0 %v65
    %178 = vmatprep.subr.bf16.mxu0 0
    %179 = vmatpush1.bf16.msra.mxu0 0
    %180 = vmatprep.subr.bf16.mxu0 0
    %181 = vmatpush1.bf16.msra.mxu0 0
    %182 = vmatprep.subr.bf16.mxu0 0
    %183 = vmatpush1.bf16.msra.mxu0 0
    %184 = vmatprep.subr.bf16.mxu0 0
    %185 = vmatpush1.bf16.msra.mxu0 0
    %186 = vmatprep.subr.bf16.mxu0 0
    %187 = vmatpush1.bf16.msra.mxu0 0
    %188 = vmatprep.subr.bf16.mxu0 0
    %189 = vmatpush1.bf16.msra.mxu0 0
    %190 = vmatprep.subr.bf16.mxu0 0
    %191 = vmatpush1.bf16.msra.mxu0 0
    %192 = vmatprep.subr.bf16.mxu0 0
    %193 = vmatpush1.bf16.msra.mxu0 0
    %194 = vmatprep.mubr.bf16.mxu0 0
    %195 = vmatmul.mubr.bf16.gmra.mrb[0].mxu0 0
    %v196 = vpop.f32.mrb[0].mxu0
    %v197 = vadd.f32 0.0, %v196
    %v198 = vpop.f32.mrb[0].mxu0
    %v199 = vpop.f32.mrb[0].mxu0
    %v200 = vpop.f32.mrb[0].mxu0
    %201 = vdwg.mxu0
    %v202 = vadd.f32 %v127, %v197
    %v203 = vxor.u32 %v202, 2147483648
    %v204 = vmul.f32 %v203, 1.442695
    %v205 = vpow.pop %v204
    %v206 = vadd.f32 %v205, 1.0
    %v207 = vrcp.pop %v206
    %v208 = vmul.f32 1.0, %v207
    %v209 = vtanh.pop %v202
    %210 = vrot.lane.b32.xlu0 %v208, 96
    %v211 = vpop.permute.xlu0 %210
    %212 = vrot.lane.b32.xlu0 %v209, 64
    %v213 = vpop.permute.xlu0 %212
    %214 = vrot.lane.b32.xlu0 %v208, 32
    %v215 = vpop.permute.xlu0 %214
    %v216 = vmul.f32 %v211, 0.0
    %v217 = vmul.f32 %v208, %v213
    %v218 = vadd.f32 %v216, %v217
    %v219 = vtanh.pop %v218
    %v220 = vmul.f32 %v215, %v219
    %v221 = vadd.f32 %v220, 0.0
    %v222 = vpack.c.bf16 %v220, %v220
    %223 = vmatprep.subr.bf16.mxu0 0
    %224 = vmatpush1.bf16.msra.mxu0 %v58
    %225 = vmatprep.subr.bf16.mxu0 0
    %226 = vmatpush1.bf16.msra.mxu0 %v59
    %227 = vmatprep.subr.bf16.mxu0 0
    %228 = vmatpush1.bf16.msra.mxu0 %v60
    %229 = vmatprep.subr.bf16.mxu0 0
    %230 = vmatpush1.bf16.msra.mxu0 %v61
    %231 = vmatprep.subr.bf16.mxu0 0
    %232 = vmatpush1.bf16.msra.mxu0 %v62
    %233 = vmatprep.subr.bf16.mxu0 0
    %234 = vmatpush1.bf16.msra.mxu0 %v63
    %235 = vmatprep.subr.bf16.mxu0 0
    %236 = vmatpush1.bf16.msra.mxu0 %v64
    %237 = vmatprep.subr.bf16.mxu0 0
    %238 = vmatpush1.bf16.msra.mxu0 %v65
    %239 = vmatprep.subr.bf16.mxu0 0
    %240 = vmatpush1.bf16.msra.mxu0 0
    %241 = vmatprep.subr.bf16.mxu0 0
    %242 = vmatpush1.bf16.msra.mxu0 0
    %243 = vmatprep.subr.bf16.mxu0 0
    %244 = vmatpush1.bf16.msra.mxu0 0
    %245 = vmatprep.subr.bf16.mxu0 0
    %246 = vmatpush1.bf16.msra.mxu0 0
    %247 = vmatprep.subr.bf16.mxu0 0
    %248 = vmatpush1.bf16.msra.mxu0 0
    %249 = vmatprep.subr.bf16.mxu0 0
    %250 = vmatpush1.bf16.msra.mxu0 0
    %251 = vmatprep.subr.bf16.mxu0 0
    %252 = vmatpush1.bf16.msra.mxu0 0
    %253 = vmatprep.subr.bf16.mxu0 0
    %254 = vmatpush1.bf16.msra.mxu0 0
    %255 = vmatprep.mubr.bf16.mxu0 0
    %256 = vmatmul.mubr.bf16.gmra.mrb[0].mxu0 %v222
    %v257 = vpop.f32.mrb[0].mxu0
    %v258 = vadd.f32 0.0, %v257
    %v259 = vpop.f32.mrb[0].mxu0
    %v260 = vpop.f32.mrb[0].mxu0
    %v261 = vpop.f32.mrb[0].mxu0
    %262 = vdwg.mxu0
    %v263 = vadd.f32 %v131, %v258
    %v264 = vxor.u32 %v263, 2147483648
    %v265 = vmul.f32 %v264, 1.442695
    %v266 = vpow.pop %v265
    %v267 = vadd.f32 %v266, 1.0
    %v268 = vrcp.pop %v267
    %v269 = vmul.f32 1.0, %v268
    %v270 = vtanh.pop %v263
    %271 = vrot.lane.b32.xlu0 %v269, 96
    %v272 = vpop.permute.xlu0 %271
    %273 = vrot.lane.b32.xlu0 %v270, 64
    %v274 = vpop.permute.xlu0 %273
    %275 = vrot.lane.b32.xlu0 %v269, 32
    %v276 = vpop.permute.xlu0 %275
    %v277 = vmul.f32 %v272, %v218
    %v278 = vmul.f32 %v269, %v274
    %v279 = vadd.f32 %v277, %v278
    %v280 = vtanh.pop %v279
    %v281 = vmul.f32 %v276, %v280
    %v282 = vadd.f32 %v221, %v281
    %v283 = vpack.c.bf16 %v281, %v281
    %284 = vmatprep.subr.bf16.mxu0 0
    %285 = vmatpush1.bf16.msra.mxu0 %v58
    %286 = vmatprep.subr.bf16.mxu0 0
    %287 = vmatpush1.bf16.msra.mxu0 %v59
    %288 = vmatprep.subr.bf16.mxu0 0
    %289 = vmatpush1.bf16.msra.mxu0 %v60
    %290 = vmatprep.subr.bf16.mxu0 0
    %291 = vmatpush1.bf16.msra.mxu0 %v61
    %292 = vmatprep.subr.bf16.mxu0 0
    %293 = vmatpush1.bf16.msra.mxu0 %v62
    %294 = vmatprep.subr.bf16.mxu0 0
    %295 = vmatpush1.bf16.msra.mxu0 %v63
    %296 = vmatprep.subr.bf16.mxu0 0
    %297 = vmatpush1.bf16.msra.mxu0 %v64
    %298 = vmatprep.subr.bf16.mxu0 0
    %299 = vmatpush1.bf16.msra.mxu0 %v65
    %300 = vmatprep.subr.bf16.mxu0 0
    %301 = vmatpush1.bf16.msra.mxu0 0
    %302 = vmatprep.subr.bf16.mxu0 0
    %303 = vmatpush1.bf16.msra.mxu0 0
    %304 = vmatprep.subr.bf16.mxu0 0
    %305 = vmatpush1.bf16.msra.mxu0 0
    %306 = vmatprep.subr.bf16.mxu0 0
    %307 = vmatpush1.bf16.msra.mxu0 0
    %308 = vmatprep.subr.bf16.mxu0 0
    %309 = vmatpush1.bf16.msra.mxu0 0
    %310 = vmatprep.subr.bf16.mxu0 0
    %311 = vmatpush1.bf16.msra.mxu0 0
    %312 = vmatprep.subr.bf16.mxu0 0
    %313 = vmatpush1.bf16.msra.mxu0 0
    %314 = vmatprep.subr.bf16.mxu0 0
    %315 = vmatpush1.bf16.msra.mxu0 0
    %316 = vmatprep.mubr.bf16.mxu0 0
    %317 = vmatmul.mubr.bf16.gmra.mrb[0].mxu0 %v283
    %v318 = vpop.f32.mrb[0].mxu0
    %v319 = vadd.f32 0.0, %v318
    %v320 = vpop.f32.mrb[0].mxu0
    %v321 = vpop.f32.mrb[0].mxu0
    %v322 = vpop.f32.mrb[0].mxu0
    %323 = vdwg.mxu0
    %v324 = vadd.f32 %v136, %v319
    %v325 = vxor.u32 %v324, 2147483648
    %v326 = vmul.f32 %v325, 1.442695
    %v327 = vpow.pop %v326
    %v328 = vadd.f32 %v327, 1.0
    %v329 = vrcp.pop %v328
    %v330 = vmul.f32 1.0, %v329
    %v331 = vtanh.pop %v324
    %332 = vrot.lane.b32.xlu0 %v330, 96
    %v333 = vpop.permute.xlu0 %332
    %334 = vrot.lane.b32.xlu0 %v331, 64
    %v335 = vpop.permute.xlu0 %334
    %336 = vrot.lane.b32.xlu0 %v330, 32
    %v337 = vpop.permute.xlu0 %336
    %v338 = vmul.f32 %v333, %v279
    %v339 = vmul.f32 %v330, %v335
    %v340 = vadd.f32 %v338, %v339
    %v341 = vtanh.pop %v340
    %v342 = vmul.f32 %v337, %v341
    %v343 = vadd.f32 %v282, %v342
    %v344 = vpack.c.bf16 %v342, %v342
    %345 = vmatprep.subr.bf16.mxu0 0
    %346 = vmatpush1.bf16.msra.mxu0 %v58
    %347 = vmatprep.subr.bf16.mxu0 0
    %348 = vmatpush1.bf16.msra.mxu0 %v59
    %349 = vmatprep.subr.bf16.mxu0 0
    %350 = vmatpush1.bf16.msra.mxu0 %v60
    %351 = vmatprep.subr.bf16.mxu0 0
    %352 = vmatpush1.bf16.msra.mxu0 %v61
    %353 = vmatprep.subr.bf16.mxu0 0
    %354 = vmatpush1.bf16.msra.mxu0 %v62
    %355 = vmatprep.subr.bf16.mxu0 0
    %356 = vmatpush1.bf16.msra.mxu0 %v63
    %357 = vmatprep.subr.bf16.mxu0 0
    %358 = vmatpush1.bf16.msra.mxu0 %v64
    %359 = vmatprep.subr.bf16.mxu0 0
    %360 = vmatpush1.bf16.msra.mxu0 %v65
    %361 = vmatprep.subr.bf16.mxu0 0
    %362 = vmatpush1.bf16.msra.mxu0 0
    %363 = vmatprep.subr.bf16.mxu0 0
    %364 = vmatpush1.bf16.msra.mxu0 0
    %365 = vmatprep.subr.bf16.mxu0 0
    %366 = vmatpush1.bf16.msra.mxu0 0
    %367 = vmatprep.subr.bf16.mxu0 0
    %368 = vmatpush1.bf16.msra.mxu0 0
    %369 = vmatprep.subr.bf16.mxu0 0
    %370 = vmatpush1.bf16.msra.mxu0 0
    %371 = vmatprep.subr.bf16.mxu0 0
    %372 = vmatpush1.bf16.msra.mxu0 0
    %373 = vmatprep.subr.bf16.mxu0 0
    %374 = vmatpush1.bf16.msra.mxu0 0
    %375 = vmatprep.subr.bf16.mxu0 0
    %376 = vmatpush1.bf16.msra.mxu0 0
    %377 = vmatprep.mubr.bf16.mxu0 0
    %378 = vmatmul.mubr.bf16.gmra.mrb[0].mxu0 %v344
    %v379 = vpop.f32.mrb[0].mxu0
    %v380 = vadd.f32 0.0, %v379
    %v381 = vpop.f32.mrb[0].mxu0
    %v382 = vpop.f32.mrb[0].mxu0
    %v383 = vpop.f32.mrb[0].mxu0
    %384 = vdwg.mxu0
    %v385 = vadd.f32 %v141, %v380
    %v386 = vxor.u32 %v385, 2147483648
    %v387 = vmul.f32 %v386, 1.442695
    %v388 = vpow.pop %v387
    %v389 = vadd.f32 %v388, 1.0
    %v390 = vrcp.pop %v389
    %v391 = vmul.f32 1.0, %v390
    %v392 = vtanh.pop %v385
    %393 = vrot.lane.b32.xlu0 %v391, 96
    %v394 = vpop.permute.xlu0 %393
    %395 = vrot.lane.b32.xlu0 %v392, 64
    %v396 = vpop.permute.xlu0 %395
    %397 = vrot.lane.b32.xlu0 %v391, 32
    %v398 = vpop.permute.xlu0 %397
    %v399 = vmul.f32 %v394, %v340
    %v400 = vmul.f32 %v391, %v396
    %v401 = vadd.f32 %v399, %v400
    %v402 = vtanh.pop %v401
    %v403 = vmul.f32 %v398, %v402
    %v404 = vadd.f32 %v343, %v403
    %v405 = vpack.c.bf16 %v403, %v403
    %406 = vmatprep.subr.bf16.mxu0 0
    %407 = vmatpush1.bf16.msra.mxu0 %v58
    %408 = vmatprep.subr.bf16.mxu0 0
    %409 = vmatpush1.bf16.msra.mxu0 %v59
    %410 = vmatprep.subr.bf16.mxu0 0
    %411 = vmatpush1.bf16.msra.mxu0 %v60
    %412 = vmatprep.subr.bf16.mxu0 0
    %413 = vmatpush1.bf16.msra.mxu0 %v61
    %414 = vmatprep.subr.bf16.mxu0 0
    %415 = vmatpush1.bf16.msra.mxu0 %v62
    %416 = vmatprep.subr.bf16.mxu0 0
    %417 = vmatpush1.bf16.msra.mxu0 %v63
    %418 = vmatprep.subr.bf16.mxu0 0
    %419 = vmatpush1.bf16.msra.mxu0 %v64
    %420 = vmatprep.subr.bf16.mxu0 0
    %421 = vmatpush1.bf16.msra.mxu0 %v65
    %422 = vmatprep.subr.bf16.mxu0 0
    %423 = vmatpush1.bf16.msra.mxu0 0
    %424 = vmatprep.subr.bf16.mxu0 0
    %425 = vmatpush1.bf16.msra.mxu0 0
    %426 = vmatprep.subr.bf16.mxu0 0
    %427 = vmatpush1.bf16.msra.mxu0 0
    %428 = vmatprep.subr.bf16.mxu0 0
    %429 = vmatpush1.bf16.msra.mxu0 0
    %430 = vmatprep.subr.bf16.mxu0 0
    %431 = vmatpush1.bf16.msra.mxu0 0
    %432 = vmatprep.subr.bf16.mxu0 0
    %433 = vmatpush1.bf16.msra.mxu0 0
    %434 = vmatprep.subr.bf16.mxu0 0
    %435 = vmatpush1.bf16.msra.mxu0 0
    %436 = vmatprep.subr.bf16.mxu0 0
    %437 = vmatpush1.bf16.msra.mxu0 0
    %438 = vmatprep.mubr.bf16.mxu0 0
    %439 = vmatmul.mubr.bf16.gmra.mrb[0].mxu0 %v405
    %v440 = vpop.f32.mrb[0].mxu0
    %v441 = vadd.f32 0.0, %v440
    %v442 = vpop.f32.mrb[0].mxu0
    %v443 = vpop.f32.mrb[0].mxu0
    %v444 = vpop.f32.mrb[0].mxu0
    %445 = vdwg.mxu0
    %v446 = vadd.f32 %v146, %v441
    %v447 = vxor.u32 %v446, 2147483648
    %v448 = vmul.f32 %v447, 1.442695
    %v449 = vpow.pop %v448
    %v450 = vadd.f32 %v449, 1.0
    %v451 = vrcp.pop %v450
    %v452 = vmul.f32 1.0, %v451
    %v453 = vtanh.pop %v446
    %454 = vrot.lane.b32.xlu0 %v452, 96
    %v455 = vpop.permute.xlu0 %454
    %456 = vrot.lane.b32.xlu0 %v453, 64
    %v457 = vpop.permute.xlu0 %456
    %458 = vrot.lane.b32.xlu0 %v452, 32
    %v459 = vpop.permute.xlu0 %458
    %v460 = vmul.f32 %v455, %v401
    %v461 = vmul.f32 %v452, %v457
    %v462 = vadd.f32 %v460, %v461
    %v463 = vtanh.pop %v462
    %v464 = vmul.f32 %v459, %v463
    %v465 = vadd.f32 %v404, %v464
    %v466 = vpack.c.bf16 %v464, %v464
    %467 = vmatprep.subr.bf16.mxu0 0
    %468 = vmatpush1.bf16.msra.mxu0 %v58
    %469 = vmatprep.subr.bf16.mxu0 0
    %470 = vmatpush1.bf16.msra.mxu0 %v59
    %471 = vmatprep.subr.bf16.mxu0 0
    %472 = vmatpush1.bf16.msra.mxu0 %v60
    %473 = vmatprep.subr.bf16.mxu0 0
    %474 = vmatpush1.bf16.msra.mxu0 %v61
    %475 = vmatprep.subr.bf16.mxu0 0
    %476 = vmatpush1.bf16.msra.mxu0 %v62
    %477 = vmatprep.subr.bf16.mxu0 0
    %478 = vmatpush1.bf16.msra.mxu0 %v63
    %479 = vmatprep.subr.bf16.mxu0 0
    %480 = vmatpush1.bf16.msra.mxu0 %v64
    %481 = vmatprep.subr.bf16.mxu0 0
    %482 = vmatpush1.bf16.msra.mxu0 %v65
    %483 = vmatprep.subr.bf16.mxu0 0
    %484 = vmatpush1.bf16.msra.mxu0 0
    %485 = vmatprep.subr.bf16.mxu0 0
    %486 = vmatpush1.bf16.msra.mxu0 0
    %487 = vmatprep.subr.bf16.mxu0 0
    %488 = vmatpush1.bf16.msra.mxu0 0
    %489 = vmatprep.subr.bf16.mxu0 0
    %490 = vmatpush1.bf16.msra.mxu0 0
    %491 = vmatprep.subr.bf16.mxu0 0
    %492 = vmatpush1.bf16.msra.mxu0 0
    %493 = vmatprep.subr.bf16.mxu0 0
    %494 = vmatpush1.bf16.msra.mxu0 0
    %495 = vmatprep.subr.bf16.mxu0 0
    %496 = vmatpush1.bf16.msra.mxu0 0
    %497 = vmatprep.subr.bf16.mxu0 0
    %498 = vmatpush1.bf16.msra.mxu0 0
    %499 = vmatprep.mubr.bf16.mxu0 0
    %500 = vmatmul.mubr.bf16.gmra.mrb[0].mxu0 %v466
    %v501 = vpop.f32.mrb[0].mxu0
    %v502 = vadd.f32 0.0, %v501
    %v503 = vpop.f32.mrb[0].mxu0
    %v504 = vpop.f32.mrb[0].mxu0
    %v505 = vpop.f32.mrb[0].mxu0
    %506 = vdwg.mxu0
    %v507 = vadd.f32 %v151, %v502
    %v508 = vxor.u32 %v507, 2147483648
    %v509 = vmul.f32 %v508, 1.442695
    %v510 = vpow.pop %v509
    %v511 = vadd.f32 %v510, 1.0
    %v512 = vrcp.pop %v511
    %v513 = vmul.f32 1.0, %v512
    %v514 = vtanh.pop %v507
    %515 = vrot.lane.b32.xlu0 %v513, 96
    %v516 = vpop.permute.xlu0 %515
    %517 = vrot.lane.b32.xlu0 %v514, 64
    %v518 = vpop.permute.xlu0 %517
    %519 = vrot.lane.b32.xlu0 %v513, 32
    %v520 = vpop.permute.xlu0 %519
    %v521 = vmul.f32 %v516, %v462
    %v522 = vmul.f32 %v513, %v518
    %v523 = vadd.f32 %v521, %v522
    %v524 = vtanh.pop %v523
    %v525 = vmul.f32 %v520, %v524
    %v526 = vadd.f32 %v465, %v525
    %v527 = vpack.c.bf16 %v525, %v525
    %528 = vmatprep.subr.bf16.mxu0 0
    %529 = vmatpush1.bf16.msra.mxu0 %v58
    %530 = vmatprep.subr.bf16.mxu0 0
    %531 = vmatpush1.bf16.msra.mxu0 %v59
    %532 = vmatprep.subr.bf16.mxu0 0
    %533 = vmatpush1.bf16.msra.mxu0 %v60
    %534 = vmatprep.subr.bf16.mxu0 0
    %535 = vmatpush1.bf16.msra.mxu0 %v61
    %536 = vmatprep.subr.bf16.mxu0 0
    %537 = vmatpush1.bf16.msra.mxu0 %v62
    %538 = vmatprep.subr.bf16.mxu0 0
    %539 = vmatpush1.bf16.msra.mxu0 %v63
    %540 = vmatprep.subr.bf16.mxu0 0
    %541 = vmatpush1.bf16.msra.mxu0 %v64
    %542 = vmatprep.subr.bf16.mxu0 0
    %543 = vmatpush1.bf16.msra.mxu0 %v65
    %544 = vmatprep.subr.bf16.mxu0 0
    %545 = vmatpush1.bf16.msra.mxu0 0
    %546 = vmatprep.subr.bf16.mxu0 0
    %547 = vmatpush1.bf16.msra.mxu0 0
    %548 = vmatprep.subr.bf16.mxu0 0
    %549 = vmatpush1.bf16.msra.mxu0 0
    %550 = vmatprep.subr.bf16.mxu0 0
    %551 = vmatpush1.bf16.msra.mxu0 0
    %552 = vmatprep.subr.bf16.mxu0 0
    %553 = vmatpush1.bf16.msra.mxu0 0
    %554 = vmatprep.subr.bf16.mxu0 0
    %555 = vmatpush1.bf16.msra.mxu0 0
    %556 = vmatprep.subr.bf16.mxu0 0
    %557 = vmatpush1.bf16.msra.mxu0 0
    %558 = vmatprep.subr.bf16.mxu0 0
    %559 = vmatpush1.bf16.msra.mxu0 0
    %560 = vmatprep.mubr.bf16.mxu0 0
    %561 = vmatmul.mubr.bf16.gmra.mrb[0].mxu0 %v527
    %v562 = vpop.f32.mrb[0].mxu0
    %v563 = vadd.f32 0.0, %v562
    %v564 = vpop.f32.mrb[0].mxu0
    %v565 = vpop.f32.mrb[0].mxu0
    %v566 = vpop.f32.mrb[0].mxu0
    %567 = vdwg.mxu0
    %v568 = vadd.f32 %v156, %v563
    %v569 = vxor.u32 %v568, 2147483648
    %v570 = vmul.f32 %v569, 1.442695
    %v571 = vpow.pop %v570
    %v572 = vadd.f32 %v571, 1.0
    %v573 = vrcp.pop %v572
    %v574 = vmul.f32 1.0, %v573
    %v575 = vtanh.pop %v568
    %576 = vrot.lane.b32.xlu0 %v574, 96
    %v577 = vpop.permute.xlu0 %576
    %578 = vrot.lane.b32.xlu0 %v575, 64
    %v579 = vpop.permute.xlu0 %578
    %580 = vrot.lane.b32.xlu0 %v574, 32
    %v581 = vpop.permute.xlu0 %580
    %v582 = vmul.f32 %v577, %v523
    %v583 = vmul.f32 %v574, %v579
    %v584 = vadd.f32 %v582, %v583
    %v585 = vtanh.pop %v584
    %v586 = vmul.f32 %v581, %v585
    %v587 = vadd.f32 %v526, %v586
    %v588 = vpack.c.bf16 %v586, %v586
    %589 = vmatprep.subr.bf16.mxu0 0
    %590 = vmatpush1.bf16.msra.mxu0 %v58
    %591 = vmatprep.subr.bf16.mxu0 0
    %592 = vmatpush1.bf16.msra.mxu0 %v59
    %593 = vmatprep.subr.bf16.mxu0 0
    %594 = vmatpush1.bf16.msra.mxu0 %v60
    %595 = vmatprep.subr.bf16.mxu0 0
    %596 = vmatpush1.bf16.msra.mxu0 %v61
    %597 = vmatprep.subr.bf16.mxu0 0
    %598 = vmatpush1.bf16.msra.mxu0 %v62
    %599 = vmatprep.subr.bf16.mxu0 0
    %600 = vmatpush1.bf16.msra.mxu0 %v63
    %601 = vmatprep.subr.bf16.mxu0 0
    %602 = vmatpush1.bf16.msra.mxu0 %v64
    %603 = vmatprep.subr.bf16.mxu0 0
    %604 = vmatpush1.bf16.msra.mxu0 %v65
    %605 = vmatprep.subr.bf16.mxu0 0
    %606 = vmatpush1.bf16.msra.mxu0 0
    %607 = vmatprep.subr.bf16.mxu0 0
    %608 = vmatpush1.bf16.msra.mxu0 0
    %609 = vmatprep.subr.bf16.mxu0 0
    %610 = vmatpush1.bf16.msra.mxu0 0
    %611 = vmatprep.subr.bf16.mxu0 0
    %612 = vmatpush1.bf16.msra.mxu0 0
    %613 = vmatprep.subr.bf16.mxu0 0
    %614 = vmatpush1.bf16.msra.mxu0 0
    %615 = vmatprep.subr.bf16.mxu0 0
    %616 = vmatpush1.bf16.msra.mxu0 0
    %617 = vmatprep.subr.bf16.mxu0 0
    %618 = vmatpush1.bf16.msra.mxu0 0
    %619 = vmatprep.subr.bf16.mxu0 0
    %620 = vmatpush1.bf16.msra.mxu0 0
    %621 = vmatprep.mubr.bf16.mxu0 0
    %622 = vmatmul.mubr.bf16.gmra.mrb[0].mxu0 %v588
    %v623 = vpop.f32.mrb[0].mxu0
    %v624 = vadd.f32 0.0, %v623
    %v625 = vpop.f32.mrb[0].mxu0
    %v626 = vpop.f32.mrb[0].mxu0
    %v627 = vpop.f32.mrb[0].mxu0
    %628 = vdwg.mxu0
    %v629 = vadd.f32 %v161, %v624
    %v630 = vxor.u32 %v629, 2147483648
    %v631 = vmul.f32 %v630, 1.442695
    %v632 = vpow.pop %v631
    %v633 = vadd.f32 %v632, 1.0
    %v634 = vrcp.pop %v633
    %v635 = vmul.f32 1.0, %v634
    %v636 = vtanh.pop %v629
    %637 = vrot.lane.b32.xlu0 %v635, 96
    %v638 = vpop.permute.xlu0 %637
    %639 = vrot.lane.b32.xlu0 %v636, 64
    %v640 = vpop.permute.xlu0 %639
    %641 = vrot.lane.b32.xlu0 %v635, 32
    %v642 = vpop.permute.xlu0 %641
    %v643 = vmul.f32 %v638, %v584
    %v644 = vmul.f32 %v635, %v640
    %v645 = vadd.f32 %v643, %v644
    %v646 = vtanh.pop %v645
    %v647 = vmul.f32 %v642, %v646
    %v648 = vadd.f32 %v587, %v647
    %v649 = vmul.f32 %v648, 0.125
    %v650 = vld [vmem:[#allocation4 + $0x90] sm:$0xff]
    %v651 = vld [vmem:[#allocation4 + $0x98] sm:$0xff]
    %v652 = vld [vmem:[#allocation4 + $0xa0] sm:$0xff]
    %v653 = vld [vmem:[#allocation4 + $0xa8] sm:$0xff]
    %v654 = vld [vmem:[#allocation4 + $0xb0] sm:$0xff]
    %v655 = vld [vmem:[#allocation4 + $0xb8] sm:$0xff]
    %v656 = vld [vmem:[#allocation4 + $0xc0] sm:$0xff]
    %v657 = vld [vmem:[#allocation4 + $0xc8] sm:$0xff]
    %v658 = vld [vmem:[#allocation4 + $0xd0] sm:$0xff]
    %v659 = vld [vmem:[#allocation4 + $0xd8] sm:$0xff]
    %v660 = vld [vmem:[#allocation4 + $0xe0] sm:$0xff]
    %v661 = vld [vmem:[#allocation4 + $0xe8] sm:$0xff]
    %v662 = vld [vmem:[#allocation4 + $0xf0] sm:$0xff]
    %v663 = vld [vmem:[#allocation4 + $0xf8] sm:$0xff]
    %v664 = vld [vmem:[#allocation4 + $0x100] sm:$0xff]
    %v665 = vld [vmem:[#allocation4 + $0x108] sm:$0xff]
    %v666 = vpack.c.bf16 %v651, %v650
    %v667 = vpack.c.bf16 %v653, %v652
    %v668 = vpack.c.bf16 %v655, %v654
    %v669 = vpack.c.bf16 %v657, %v656
    %v670 = vpack.c.bf16 %v659, %v658
    %v671 = vpack.c.bf16 %v661, %v660
    %v672 = vpack.c.bf16 %v663, %v662
    %v673 = vpack.c.bf16 %v665, %v664
    %v674 = vld [vmem:[#allocation4 + $0x110] sm:$0x1]
    %v675 = vpack.c.bf16 %v649, %v649
    %v676 = vlaneseq
    %v677 = vshrl.u32 %v676, 7
    %v678 = vsub.s32 0, %v677
    %v679 = vrot.slane %v674, %v678
    %680 = vmatprep.subr.bf16.mxu0 0
    %681 = vmatpush1.bf16.msra.mxu0 %v666
    %682 = vmatprep.subr.bf16.mxu0 0
    %683 = vmatpush1.bf16.msra.mxu0 %v667
    %684 = vmatprep.subr.bf16.mxu0 0
    %685 = vmatpush1.bf16.msra.mxu0 %v668
    %686 = vmatprep.subr.bf16.mxu0 0
    %687 = vmatpush1.bf16.msra.mxu0 %v669
    %688 = vmatprep.subr.bf16.mxu0 0
    %689 = vmatpush1.bf16.msra.mxu0 %v670
    %690 = vmatprep.subr.bf16.mxu0 0
    %691 = vmatpush1.bf16.msra.mxu0 %v671
    %692 = vmatprep.subr.bf16.mxu0 0
    %693 = vmatpush1.bf16.msra.mxu0 %v672
    %694 = vmatprep.subr.bf16.mxu0 0
    %695 = vmatpush1.bf16.msra.mxu0 %v673
    %696 = vmatprep.subr.bf16.mxu0 0
    %697 = vmatpush1.bf16.msra.mxu0 0
    %698 = vmatprep.subr.bf16.mxu0 0
    %699 = vmatpush1.bf16.msra.mxu0 0
    %700 = vmatprep.subr.bf16.mxu0 0
    %701 = vmatpush1.bf16.msra.mxu0 0
    %702 = vmatprep.subr.bf16.mxu0 0
    %703 = vmatpush1.bf16.msra.mxu0 0
    %704 = vmatprep.subr.bf16.mxu0 0
    %705 = vmatpush1.bf16.msra.mxu0 0
    %706 = vmatprep.subr.bf16.mxu0 0
    %707 = vmatpush1.bf16.msra.mxu0 0
    %708 = vmatprep.subr.bf16.mxu0 0
    %709 = vmatpush1.bf16.msra.mxu0 0
    %710 = vmatprep.subr.bf16.mxu0 0
    %711 = vmatpush1.bf16.msra.mxu0 0
    %712 = vmatprep.mubr.bf16.mxu0 0
    %713 = vmatmul.mubr.bf16.gmra.mrb[0].mxu0 %v675
    %v714 = vpop.f32.mrb[0].mxu0
    %v715 = vadd.f32 %v679, %v714
    %v716 = vpop.f32.mrb[0].mxu0
    %v717 = vpop.f32.mrb[0].mxu0
    %v718 = vpop.f32.mrb[0].mxu0
    %719 = vdwg.mxu0
    %v720 = vld [vmem:[#allocation4 + $0x118] sm:$0xff]
    %v721 = vld [vmem:[#allocation4 + $0x120] sm:$0xff]
    %v722 = vld [vmem:[#allocation4 + $0x128] sm:$0xff]
    %v723 = vld [vmem:[#allocation4 + $0x130] sm:$0xff]
    %v724 = vld [vmem:[#allocation4 + $0x138] sm:$0xff]
    %v725 = vld [vmem:[#allocation4 + $0x140] sm:$0xff]
    %v726 = vld [vmem:[#allocation4 + $0x148] sm:$0xff]
    %v727 = vld [vmem:[#allocation4 + $0x150] sm:$0xff]
    %v728 = vld [vmem:[#allocation4 + $0x158] sm:$0xff]
    %v729 = vld [vmem:[#allocation4 + $0x160] sm:$0xff]
    %v730 = vld [vmem:[#allocation4 + $0x168] sm:$0xff]
    %v731 = vld [vmem:[#allocation4 + $0x170] sm:$0xff]
    %v732 = vld [vmem:[#allocation4 + $0x178] sm:$0xff]
    %v733 = vld [vmem:[#allocation4 + $0x180] sm:$0xff]
    %v734 = vld [vmem:[#allocation4 + $0x188] sm:$0xff]
    %v735 = vld [vmem:[#allocation4 + $0x190] sm:$0xff]
    %v736 = vpack.c.bf16 %v721, %v720
    %v737 = vpack.c.bf16 %v723, %v722
    %v738 = vpack.c.bf16 %v725, %v724
    %v739 = vpack.c.bf16 %v727, %v726
    %v740 = vpack.c.bf16 %v729, %v728
    %v741 = vpack.c.bf16 %v731, %v730
    %v742 = vpack.c.bf16 %v733, %v732
    %v743 = vpack.c.bf16 %v735, %v734
    %v744 = vld [vmem:[#allocation4 + $0x198] sm:$0x1]
    %v745 = vpack.c.bf16 %v715, %v715
    %v746 = vlaneseq
    %v747 = vshrl.u32 %v746, 7
    %v748 = vsub.s32 0, %v747
    %v749 = vrot.slane %v744, %v748
    %750 = vmatprep.subr.bf16.mxu0 0
    %751 = vmatpush1.bf16.msra.mxu0 %v736
    %752 = vmatprep.subr.bf16.mxu0 0
    %753 = vmatpush1.bf16.msra.mxu0 %v737
    %754 = vmatprep.subr.bf16.mxu0 0
    %755 = vmatpush1.bf16.msra.mxu0 %v738
    %756 = vmatprep.subr.bf16.mxu0 0
    %757 = vmatpush1.bf16.msra.mxu0 %v739
    %758 = vmatprep.subr.bf16.mxu0 0
    %759 = vmatpush1.bf16.msra.mxu0 %v740
    %760 = vmatprep.subr.bf16.mxu0 0
    %761 = vmatpush1.bf16.msra.mxu0 %v741
    %762 = vmatprep.subr.bf16.mxu0 0
    %763 = vmatpush1.bf16.msra.mxu0 %v742
    %764 = vmatprep.subr.bf16.mxu0 0
    %765 = vmatpush1.bf16.msra.mxu0 %v743
    %766 = vmatprep.subr.bf16.mxu0 0
    %767 = vmatpush1.bf16.msra.mxu0 0
    %768 = vmatprep.subr.bf16.mxu0 0
    %769 = vmatpush1.bf16.msra.mxu0 0
    %770 = vmatprep.subr.bf16.mxu0 0
    %771 = vmatpush1.bf16.msra.mxu0 0
    %772 = vmatprep.subr.bf16.mxu0 0
    %773 = vmatpush1.bf16.msra.mxu0 0
    %774 = vmatprep.subr.bf16.mxu0 0
    %775 = vmatpush1.bf16.msra.mxu0 0
    %776 = vmatprep.subr.bf16.mxu0 0
    %777 = vmatpush1.bf16.msra.mxu0 0
    %778 = vmatprep.subr.bf16.mxu0 0
    %779 = vmatpush1.bf16.msra.mxu0 0
    %780 = vmatprep.subr.bf16.mxu0 0
    %781 = vmatpush1.bf16.msra.mxu0 0
    %782 = vmatprep.mubr.bf16.mxu0 0
    %783 = vmatmul.mubr.bf16.gmra.mrb[0].mxu0 %v745
    %v784 = vpop.f32.mrb[0].mxu0
    %v785 = vadd.f32 %v749, %v784
    %v786 = vpop.f32.mrb[0].mxu0
    %v787 = vpop.f32.mrb[0].mxu0
    %v788 = vpop.f32.mrb[0].mxu0
    %789 = vdwg.mxu0
    %vm790 = vcmask 1041408
    %v791 = vsel %vm790, %v785, -inf
    %792 = vmax.xlane.f32.xlu0 %v791
    %v793 = vpop.xlane.xlu0 %792
    %v794 = vsub.f32 %v785, %v793
    %v795 = vmul.f32 %v794, 1.442695
    %v796 = vpow.pop %v795
    %v797 = vsel %vm790, %v796, 0.0
    %798 = vadd.xlane.f32.xlu0 %v797
    %v799 = vpop.xlane.xlu0 %798
    %v800 = vrcp.pop %v799
    %v801 = vmul.f32 %v796, %v800
    %v802 = vlaneseq
    %v803 = vand.u32 %v802, 127
    %vm804 = vcmp.eq.f32.partialorder %v785, %v793
    %v805 = vsel %vm804, %v803, 128
    %v806 = vsel %vm790, %v805, 2147483647
    %v807 = vand.u32 %v806, 65535
    %v808 = vshra.s32 %v806, 16
    %v809 = vcvt.s32.f32 %v807
    %v810 = vcvt.s32.f32 %v808
    %811 = vmin.xlane.f32.xlu0 %v810
    %v812 = vpop.xlane.xlu0 %811
    %vm813 = vcmp.eq.f32.partialorder %v810, %v812
    %v814 = vsel %vm813, %v809, inf
    %815 = vmin.xlane.f32.xlu0 %v814
    %v816 = vpop.xlane.xlu0 %815
    %v817 = vcvt.f32.s32 %v816
    %v818 = vcvt.f32.s32 %v812
    %v819 = vshll.u32 %v818, 16
    %v820 = vadd.s32 %v819, %v817
    %vm821 = vcmp.eq.s32.totalorder %v803, 4
    %v822 = vcvt.s32.f32 %v820
    %v823 = vsel %vm821, %v822, %v801
    %824 = vst [vmem:[%s2] sm:$0x3] %v823
    // Predicated region
    $region18: #{sklearn_model_forward.1} parent=1 // pred_check
      _
    $region19: #{sklearn_model_forward.1} parent=1 // pred_check_branch
      %826 = sbr.rel (0) target = $region21
    $region20: #{sklearn_model_forward.1} parent=1 // pred_region
      _
    $region21: #{sklearn_model_forward.1} parent=1 // pred_fallthru
      _
    // Predicated region
    $region22: #{sklearn_model_forward.1} parent=1 // pred_check
      _
    $region23: #{sklearn_model_forward.1} parent=1 // pred_check_branch
      %828 = sbr.rel (0) target = $region25
    $region24: #{sklearn_model_forward.1} parent=1 // pred_region
      _
    $region25: #{sklearn_model_forward.1} parent=1 // pred_fallthru
      _
    %829 = vsyncpa [#allocation3], 1
    %830 = vsyncpa [#allocation5], 1

</llo_original>
